<compile_context>
chip_gen: v7x
topology: tpu7x:2x2x1
jax: 0.10.0
libtpu: 0.0.40
codegen_flags: <defaults>
</compile_context>

<pallas_src>
import functools
import math

import jax
import jax.numpy as jnp
from jax.experimental import pallas as pl
from jax.experimental.pallas import tpu as pltpu

_LANE = 128        # lane width (last dim alignment)
_SUBLANE = 8       # sublane width (second-to-last dim alignment, f32)
_MIN_SPLIT_ROWS = 512   # only split a single-tile batch across 2 tiles above this


def _round_up(n, m):
    return ((n + m - 1) // m) * m


def _pad2(a, rows, cols):
    r, c = a.shape
    return jnp.pad(a, ((0, rows - r), (0, cols - c)))


# ---------------------------------------------------------------------------
# Pallas kernel: fused 3-layer MLP (matmuls on MXU, activations on VPU/EUP).
# ---------------------------------------------------------------------------
def _actor_mlp_kernel(x_ref, w1_ref, b1_ref, w2_ref, b2_ref, w3_ref, b3_ref,
                      out_ref, *, matmul_dtype):
    def dense(h, w_ref, b_ref):
        lhs = h.astype(matmul_dtype)
        rhs = w_ref[...].astype(matmul_dtype)
        return jnp.dot(lhs, rhs, preferred_element_type=jnp.float32) + b_ref[...]

    # layer 1: Linear + LeakyReLU(0.01)
    h = dense(x_ref[...], w1_ref, b1_ref)
    h = jnp.maximum(h, 0.01 * h)

    # layer 2: Linear + LeakyReLU(0.01)
    h = dense(h, w2_ref, b2_ref)
    h = jnp.maximum(h, 0.01 * h)

    # output layer: Linear + tanh
    h = dense(h, w3_ref, b3_ref)
    out_ref[...] = jnp.tanh(h).astype(out_ref.dtype)


def _choose_batch_tile(B, batch_tile):
    """Pick a batch tile: multiple of 8 (or the full batch), favoring an even
    tile count so the parallel batch axis balances v7x's two TensorCores."""
    batch_tile = max(_SUBLANE, _round_up(batch_tile, _SUBLANE))
    if B <= batch_tile:
        if B >= 2 * _MIN_SPLIT_ROWS:
            # Two balanced tiles so both v7x TensorCores get work.
            return _round_up(pl.cdiv(B, 2), _SUBLANE)
        # Single tile covering the whole batch: block dim == full array dim,
        # so no divisibility requirement and no padding needed.
        return B
    # Large batch: tile near `batch_tile` but with an even tile count.
    n_tiles = _round_up(pl.cdiv(B, batch_tile), 2)
    return _round_up(pl.cdiv(B, n_tiles), _SUBLANE)


def actor_agent_forward(x, params, *, batch_tile=2048,
                        matmul_dtype=jnp.float32):
    """x: (B, num_inputs) f32. params: (in,out) weights, (1,out) biases.

    Returns policy of shape (B, action_size), f32.
    """
    w1, b1 = params["w1"], params["b1"]
    w2, b2 = params["w2"], params["b2"]
    w3, b3 = params["w3"], params["b3"]

    B, f_in = x.shape
    h1 = w1.shape[1]
    h2 = w2.shape[1]
    act = w3.shape[1]

    # Pad ONLY the hidden dims of the tiny resident weights to lane width
    # (exact: zero-padded rows/cols contribute nothing). The streamed arrays
    # (x, output) are not padded, so no extra HBM bytes / pad / slice passes.
    h1_p = _round_up(h1, _LANE)
    h2_p = _round_up(h2, _LANE)

    w1p, b1p = _pad2(w1, f_in, h1_p), _pad2(b1, 1, h1_p)
    w2p, b2p = _pad2(w2, h1_p, h2_p), _pad2(b2, 1, h2_p)
    w3p, b3p = _pad2(w3, h2_p, act), _pad2(b3, 1, act)

    tb = _choose_batch_tile(B, batch_tile)
    n_tiles = pl.cdiv(B, tb)

    # Weights/biases: full block, same index every grid step -> resident in
    # VMEM across the batch grid (fetched once).
    def resident(a):
        return pl.BlockSpec(a.shape, lambda i: (0,) * a.ndim)

    # Honest cost estimate with true (unpadded) dims.
    flops = 2 * B * (f_in * h1 + h1 * h2 + h2 * act)
    bytes_accessed = 4 * (x.size + w1.size + b1.size + w2.size + b2.size
                          + w3.size + b3.size + B * act)
    cost = pl.CostEstimate(flops=flops, transcendentals=B * act,
                           bytes_accessed=bytes_accessed)

    kernel = functools.partial(_actor_mlp_kernel, matmul_dtype=matmul_dtype)

    return pl.pallas_call(
        kernel,
        out_shape=jax.ShapeDtypeStruct((B, act), jnp.float32),
        grid=(n_tiles,),
        in_specs=[
            pl.BlockSpec((tb, f_in), lambda i: (i, 0)),   # x: blocked on batch
            resident(w1p), resident(b1p),
            resident(w2p), resident(b2p),
            resident(w3p), resident(b3p),
        ],
        out_specs=pl.BlockSpec((tb, act), lambda i: (i, 0)),
        compiler_params=pltpu.CompilerParams(
            dimension_semantics=("parallel",),   # shard batch across TCs (v7x)
        ),
        cost_estimate=cost,
    )(x, w1p, b1p, w2p, b2p, w3p, b3p)


# ---------------------------------------------------------------------------
# Deterministic parameter construction (mirrors __init__ + reset_parameters)
# ---------------------------------------------------------------------------
def make_params(key, num_inputs, num_units_1, num_units_2, action_size):
    # nn.Linear default init U(-1/sqrt(fan_in), 1/sqrt(fan_in)); then
    # reset_parameters() scales the weights by the nonlinearity gain.
    gain_lrelu = math.sqrt(2.0 / (1.0 + 0.01 ** 2))   # calculate_gain('leaky_relu')
    gain_tanh = 5.0 / 3.0                             # calculate_gain('tanh')

    def linear(k, fan_in, fan_out, gain):
        kw, kb = jax.random.split(k)
        bound = 1.0 / math.sqrt(fan_in)
        # stored as (in, out) so the kernel computes x @ W
        w = jax.random.uniform(kw, (fan_in, fan_out), jnp.float32,
                               -bound, bound) * gain
        b = jax.random.uniform(kb, (1, fan_out), jnp.float32, -bound, bound)
        return w, b

    k1, k2, k3 = jax.random.split(key, 3)
    w1, b1 = linear(k1, num_inputs, num_units_1, gain_lrelu)
    w2, b2 = linear(k2, num_units_1, num_units_2, gain_lrelu)
    w3, b3 = linear(k3, num_units_2, action_size, gain_tanh)
    return {"w1": w1, "b1": b1, "w2": w2, "b2": b2, "w3": w3, "b3": b3}


# ---------------------------------------------------------------------------
# Pure-JAX reference for correctness checks
# ---------------------------------------------------------------------------
def actor_agent_ref(x, p):
    lrelu = lambda v: jnp.where(v > 0, v, 0.01 * v)
    h = lrelu(x @ p["w1"] + p["b1"])
    h = lrelu(h @ p["w2"] + p["b2"])
    return jnp.tanh(h @ p["w3"] + p["b3"])


if __name__ == "__main__":
    # Small shapes consistent with the module: observation -> action MLP.
    batch = 8
    num_inputs = 32       # observation dim
    num_units_1 = 64      # args.num_units_1
    num_units_2 = 64      # args.num_units_2
    action_size = 8

    key = jax.random.PRNGKey(0)
    kx, kp, kx2 = jax.random.split(key, 3)
    x = jax.random.normal(kx, (batch, num_inputs), dtype=jnp.float32)
    params = make_params(kp, num_inputs, num_units_1, num_units_2, action_size)

    # Small-batch path (single tile == full batch).
    policy = actor_agent_forward(x, params)
    policy = jax.block_until_ready(policy)
    ref = actor_agent_ref(x, params)
    assert policy.shape == (batch, action_size)
    assert jnp.allclose(policy, ref, atol=1e-5, rtol=1e-5)

    # Larger ragged batch: multi-tile grid with an even tile count (v7x TC
    # balance), resident weights, and a masked partial last tile (no padding).
    big_b = 300
    x_big = jax.random.normal(kx2, (big_b, num_inputs), dtype=jnp.float32)
    policy_big = actor_agent_forward(x_big, params, batch_tile=128)
    policy_big = jax.block_until_ready(policy_big)
    ref_big = actor_agent_ref(x_big, params)
    assert policy_big.shape == (big_b, action_size)
    assert jnp.allclose(policy_big, ref_big, atol=1e-5, rtol=1e-5)

    # bf16 matmul-operand path (v5e fast path; f32 accumulation/activations).
    policy_bf16 = actor_agent_forward(x_big, params, matmul_dtype=jnp.bfloat16)
    policy_bf16 = jax.block_until_ready(policy_bf16)
    assert policy_bf16.shape == (big_b, action_size)
    assert jnp.allclose(policy_bf16, ref_big, atol=5e-2, rtol=0)

    print("KERNEL_OK")
</pallas_src>

<mosaic_0001>
module attributes {stable_mosaic.version = 11 : i64} {
  func.func @_actor_mlp_kernel(%arg0: i32, %arg1: memref<8x32xf32, #tpu.memory_space<vmem>>, %arg2: memref<32x128xf32, #tpu.memory_space<vmem>>, %arg3: memref<1x128xf32, #tpu.memory_space<vmem>>, %arg4: memref<128x128xf32, #tpu.memory_space<vmem>>, %arg5: memref<1x128xf32, #tpu.memory_space<vmem>>, %arg6: memref<128x8xf32, #tpu.memory_space<vmem>>, %arg7: memref<1x8xf32, #tpu.memory_space<vmem>>, %arg8: memref<8x8xf32, #tpu.memory_space<vmem>>) attributes {dimension_semantics = [#tpu.dimension_semantics<parallel>], iteration_bounds = array<i64: 1>, scalar_prefetch = 0 : i64, scratch_operands = 0 : i64, tpu.core_type = #tpu.core_type<tc>, window_params = [{transform_indices = @transform_0, window_bounds = array<i64: 8, 32>}, {pipeline_mode = #tpu.pipeline_mode<synchronous>, transform_indices = @transform_1, window_bounds = array<i64: 32, 128>}, {pipeline_mode = #tpu.pipeline_mode<synchronous>, transform_indices = @transform_2, window_bounds = array<i64: 1, 128>}, {pipeline_mode = #tpu.pipeline_mode<synchronous>, transform_indices = @transform_3, window_bounds = array<i64: 128, 128>}, {pipeline_mode = #tpu.pipeline_mode<synchronous>, transform_indices = @transform_4, window_bounds = array<i64: 1, 128>}, {pipeline_mode = #tpu.pipeline_mode<synchronous>, transform_indices = @transform_5, window_bounds = array<i64: 128, 8>}, {pipeline_mode = #tpu.pipeline_mode<synchronous>, transform_indices = @transform_6, window_bounds = array<i64: 1, 8>}, {transform_indices = @transform_7, window_bounds = array<i64: 8, 8>}]} {
    %c0 = arith.constant 0 : index
    %c0_0 = arith.constant 0 : index
    %0 = vector.load %arg1[%c0, %c0_0] : memref<8x32xf32, #tpu.memory_space<vmem>>, vector<8x32xf32>
    %c0_1 = arith.constant 0 : index
    %c0_2 = arith.constant 0 : index
    %1 = vector.load %arg2[%c0_1, %c0_2] : memref<32x128xf32, #tpu.memory_space<vmem>>, vector<32x128xf32>
    %cst = arith.constant dense<0.000000e+00> : vector<8x128xf32>
    %2 = tpu.matmul %0, %1, %cst {dimension_numbers = #tpu.dot_dimension_numbers<[1], [0], [0], [1], [0, 0, 1, 1], [], []>} : vector<8x32xf32>, vector<32x128xf32>, vector<8x128xf32> -> vector<8x128xf32>
    %c0_3 = arith.constant 0 : index
    %c0_4 = arith.constant 0 : index
    %3 = vector.load %arg3[%c0_3, %c0_4] : memref<1x128xf32, #tpu.memory_space<vmem>>, vector<1x128xf32>
    %4 = vector.broadcast %3 : vector<1x128xf32> to vector<8x128xf32>
    %5 = arith.addf %2, %4 : vector<8x128xf32>
    %cst_5 = arith.constant 0.00999999977 : f32
    %6 = vector.broadcast %cst_5 : f32 to vector<8x128xf32>
    %7 = arith.mulf %6, %5 : vector<8x128xf32>
    %8 = arith.maximumf %5, %7 : vector<8x128xf32>
    %c0_6 = arith.constant 0 : index
    %c0_7 = arith.constant 0 : index
    %9 = vector.load %arg4[%c0_6, %c0_7] : memref<128x128xf32, #tpu.memory_space<vmem>>, vector<128x128xf32>
    %cst_8 = arith.constant dense<0.000000e+00> : vector<8x128xf32>
    %10 = tpu.matmul %8, %9, %cst_8 {dimension_numbers = #tpu.dot_dimension_numbers<[1], [0], [0], [1], [0, 0, 1, 1], [], []>} : vector<8x128xf32>, vector<128x128xf32>, vector<8x128xf32> -> vector<8x128xf32>
    %c0_9 = arith.constant 0 : index
    %c0_10 = arith.constant 0 : index
    %11 = vector.load %arg5[%c0_9, %c0_10] : memref<1x128xf32, #tpu.memory_space<vmem>>, vector<1x128xf32>
    %12 = vector.broadcast %11 : vector<1x128xf32> to vector<8x128xf32>
    %13 = arith.addf %10, %12 : vector<8x128xf32>
    %cst_11 = arith.constant 0.00999999977 : f32
    %14 = vector.broadcast %cst_11 : f32 to vector<8x128xf32>
    %15 = arith.mulf %14, %13 : vector<8x128xf32>
    %16 = arith.maximumf %13, %15 : vector<8x128xf32>
    %c0_12 = arith.constant 0 : index
    %c0_13 = arith.constant 0 : index
    %17 = vector.load %arg6[%c0_12, %c0_13] : memref<128x8xf32, #tpu.memory_space<vmem>>, vector<128x8xf32>
    %cst_14 = arith.constant dense<0.000000e+00> : vector<8x8xf32>
    %18 = tpu.matmul %16, %17, %cst_14 {dimension_numbers = #tpu.dot_dimension_numbers<[1], [0], [0], [1], [0, 0, 1, 1], [], []>} : vector<8x128xf32>, vector<128x8xf32>, vector<8x8xf32> -> vector<8x8xf32>
    %c0_15 = arith.constant 0 : index
    %c0_16 = arith.constant 0 : index
    %19 = vector.load %arg7[%c0_15, %c0_16] : memref<1x8xf32, #tpu.memory_space<vmem>>, vector<1x8xf32>
    %20 = vector.broadcast %19 : vector<1x8xf32> to vector<8x8xf32>
    %21 = arith.addf %18, %20 : vector<8x8xf32>
    %22 = math.tanh %21 : vector<8x8xf32>
    %c0_17 = arith.constant 0 : index
    %c0_18 = arith.constant 0 : index
    %23 = vector.load %arg8[%c0_17, %c0_18] : memref<8x8xf32, #tpu.memory_space<vmem>>, vector<8x8xf32>
    tpu.vector_store %arg8[%c0_17, %c0_18], %22 {strides = array<i32>} : memref<8x8xf32, #tpu.memory_space<vmem>>, vector<8x8xf32>,
    return
  }
  func.func @transform_0(%arg0: i32) -> (i32, i32) {
    %c0_i32 = arith.constant 0 : i32
    %c0_i32_0 = arith.constant 0 : i32
    return %arg0, %c0_i32 : i32, i32
  }
  func.func @transform_1(%arg0: i32) -> (i32, i32) {
    %c0_i32 = arith.constant 0 : i32
    %c0_i32_0 = arith.constant 0 : i32
    %c0_i32_1 = arith.constant 0 : i32
    return %c0_i32, %c0_i32_0 : i32, i32
  }
  func.func @transform_2(%arg0: i32) -> (i32, i32) {
    %c0_i32 = arith.constant 0 : i32
    %c0_i32_0 = arith.constant 0 : i32
    %c0_i32_1 = arith.constant 0 : i32
    return %c0_i32, %c0_i32_0 : i32, i32
  }
  func.func @transform_3(%arg0: i32) -> (i32, i32) {
    %c0_i32 = arith.constant 0 : i32
    %c0_i32_0 = arith.constant 0 : i32
    %c0_i32_1 = arith.constant 0 : i32
    return %c0_i32, %c0_i32_0 : i32, i32
  }
  func.func @transform_4(%arg0: i32) -> (i32, i32) {
    %c0_i32 = arith.constant 0 : i32
    %c0_i32_0 = arith.constant 0 : i32
    %c0_i32_1 = arith.constant 0 : i32
    return %c0_i32, %c0_i32_0 : i32, i32
  }
  func.func @transform_5(%arg0: i32) -> (i32, i32) {
    %c0_i32 = arith.constant 0 : i32
    %c0_i32_0 = arith.constant 0 : i32
    %c0_i32_1 = arith.constant 0 : i32
    return %c0_i32, %c0_i32_0 : i32, i32
  }
  func.func @transform_6(%arg0: i32) -> (i32, i32) {
    %c0_i32 = arith.constant 0 : i32
    %c0_i32_0 = arith.constant 0 : i32
    %c0_i32_1 = arith.constant 0 : i32
    return %c0_i32, %c0_i32_0 : i32, i32
  }
  func.func @transform_7(%arg0: i32) -> (i32, i32) {
    %c0_i32 = arith.constant 0 : i32
    %c0_i32_0 = arith.constant 0 : i32
    return %arg0, %c0_i32 : i32, i32
  }
}

</mosaic_0001>

<llo_original>
// kernel: tpu_custom_call.1
$region0: #{tpu_custom_call.1}
  #allocation0 [shape = 'u32[]', space=smem, size = 0x4, offset = 0x4, fixed_abs, tag = 'smem constant byte address 0x4 - core index']
  #allocation1 [shape = 'u32[144,128]{1,0:T(1,128)}', space=vmem, size = 0x12000, scoped, tag = 'internal scratch']
  %s0 = inlined_call_operand.vmem [shape: f32[8,32], index: 0, kind: input, shape index: {}]
  %s1 = inlined_call_operand.hbm [shape: f32[32,128], index: 1, kind: input, shape index: {}]
  %s2 = inlined_call_operand.vmem [shape: f32[1,128], index: 2, kind: input, shape index: {}]
  %s3 = inlined_call_operand.vmem [shape: f32[128,128], index: 3, kind: input, shape index: {}]
  %s4 = inlined_call_operand.vmem [shape: f32[1,128], index: 4, kind: input, shape index: {}]
  %s5 = inlined_call_operand.vmem [shape: f32[128,8], index: 5, kind: input, shape index: {}]
  %s6 = inlined_call_operand.vmem [shape: f32[1,8], index: 6, kind: input, shape index: {}]
  %s7 = inlined_call_operand.hbm [shape: f32[8,8], index: 7, kind: output, shape index: {}]
  %s8 = sld [smem:[#allocation0]]
  $region42: #{tpu_custom_call.1} parent=0
    _
  %s10 = ssub.s32 1, %s8
  %s11 = scalar_select 0, %s10, %s8
  $region1: #{tpu_custom_call.1} parent=0
    #allocation2 [shape = 'u8[16384]{0}', space=vmem, size = 0x4000, scoped, tag = 'input window, operand 1, single buffered']
    #allocation3 [shape = 's32[1]{0}', space=sflag, size = 0x4, scoped, tag = 'scoped memory for tpu_custom_call.1']
    #allocation4 [shape = 's32[1]{0}', space=sflag, size = 0x4, scoped, tag = 'scoped memory for tpu_custom_call.1']
    #allocation5 [shape = 'u8[4096]{0}', space=vmem, size = 0x1000, scoped, tag = 'output window, operand 0, single buffered']
    %12 = vsyncpa [#allocation3], 0
    %13 = vsyncpa [#allocation4], 0
    // Predicated region
    $region2: #{tpu_custom_call.1} parent=1 // pred_check
      _
    $region3: #{tpu_custom_call.1} parent=1 // pred_check_branch
      %15 = sbr.rel (0) target = $region5
    $region4: #{tpu_custom_call.1} parent=1 // pred_region
      _
    $region5: #{tpu_custom_call.1} parent=1 // pred_fallthru
      _
    // Predicated region
    $region6: #{tpu_custom_call.1} parent=1 // pred_check
      _
    $region7: #{tpu_custom_call.1} parent=1 // pred_check_branch
      %17 = sbr.rel (0) target = $region9
    $region8: #{tpu_custom_call.1} parent=1 // pred_region
      %s19 = ssub.s32 512, 512
      %20 = vsyncadd [#allocation3], %s19
      %s21 = sshll.u32 [#allocation2], 4
      %s22 = int_to_ptr.vmem [resolvable:$true] %s21
      %27 = dma.hbm_to_vmem [thread:$0]  %s1, 512, %s22, [#allocation3], 128, 128, 8
    $region9: #{tpu_custom_call.1} parent=1 // pred_fallthru
      _
    // Predicated region
    $region10: #{tpu_custom_call.1} parent=1 // pred_check
      _
    $region11: #{tpu_custom_call.1} parent=1 // pred_check_branch
      %29 = sbr.rel (0) target = $region13
    $region12: #{tpu_custom_call.1} parent=1 // pred_region
      _
    $region13: #{tpu_custom_call.1} parent=1 // pred_fallthru
      _
    // Predicated region
    $region14: #{tpu_custom_call.1} parent=1 // pred_check
      _
    $region15: #{tpu_custom_call.1} parent=1 // pred_check_branch
      %31 = sbr.rel (0) target = $region17
    $region16: #{tpu_custom_call.1} parent=1 // pred_region
      _
    $region17: #{tpu_custom_call.1} parent=1 // pred_fallthru
      _
    // Predicated region
    $region18: #{tpu_custom_call.1} parent=1 // pred_check
      _
    $region19: #{tpu_custom_call.1} parent=1 // pred_check_branch
      %33 = sbr.rel (0) target = $region21
    $region20: #{tpu_custom_call.1} parent=1 // pred_region
      _
    $region21: #{tpu_custom_call.1} parent=1 // pred_fallthru
      _
    // Predicated region
    $region22: #{tpu_custom_call.1} parent=1 // pred_check
      _
    $region23: #{tpu_custom_call.1} parent=1 // pred_check_branch
      %35 = sbr.rel (0) target = $region25
    $region24: #{tpu_custom_call.1} parent=1 // pred_region
      _
    $region25: #{tpu_custom_call.1} parent=1 // pred_fallthru
      _
    // Predicated region
    $region26: #{tpu_custom_call.1} parent=1 // pred_check
      _
    $region27: #{tpu_custom_call.1} parent=1 // pred_check_branch
      %37 = sbr.rel (0) target = $region29
    $region28: #{tpu_custom_call.1} parent=1 // pred_region
      _
    $region29: #{tpu_custom_call.1} parent=1 // pred_fallthru
      _
    // Predicated region
    $region30: #{tpu_custom_call.1} parent=1 // pred_check
      _
    $region31: #{tpu_custom_call.1} parent=1 // pred_check_branch
      %39 = sbr.rel (0) target = $region33
    $region32: #{tpu_custom_call.1} parent=1 // pred_region
      %40 = dma.done [#allocation3], 512
    $region33: #{tpu_custom_call.1} parent=1 // pred_fallthru
      _
    %v41 = vld [vmem:[%s0] sm:$0xff]
    %v42 = vld [vmem:[#allocation2] sm:$0xff]
    %v43 = vld [vmem:[#allocation2 + $0x8] sm:$0xff]
    %v44 = vld [vmem:[#allocation2 + $0x10] sm:$0xff]
    %v45 = vld [vmem:[#allocation2 + $0x18] sm:$0xff]
    %v46 = vld [vmem:[%s2] sm:$0x1]
    %v48 = vlaneseq
    %v49 = vshrl.u32 %v48, 7
    %v50 = vsub.s32 0, %v49
    %v51 = vrot.slane %v46, %v50
    %vm53 = vcmask 261120
    %v55 = vsel %vm53, %v41, 0
    %57 = vmatprep.subr.mxu0 0.0
    %58 = vmatpush1.msra.mxu0 %v42
    %59 = vmatprep.subr.mxu0 0.0
    %60 = vmatpush1.msra.mxu0 %v43
    %61 = vmatprep.subr.mxu0 0.0
    %62 = vmatpush1.msra.mxu0 %v44
    %63 = vmatprep.subr.mxu0 0.0
    %64 = vmatpush1.msra.mxu0 %v45
    %65 = vmatprep.subr.mxu0 0.0
    %66 = vmatpush1.msra.mxu0 0.0
    %67 = vmatprep.subr.mxu0 0.0
    %68 = vmatpush1.msra.mxu0 0.0
    %69 = vmatprep.subr.mxu0 0.0
    %70 = vmatpush1.msra.mxu0 0.0
    %71 = vmatprep.subr.mxu0 0.0
    %72 = vmatpush1.msra.mxu0 0.0
    %73 = vmatprep.subr.mxu0 0.0
    %74 = vmatpush1.msra.mxu0 0.0
    %75 = vmatprep.subr.mxu0 0.0
    %76 = vmatpush1.msra.mxu0 0.0
    %77 = vmatprep.subr.mxu0 0.0
    %78 = vmatpush1.msra.mxu0 0.0
    %79 = vmatprep.subr.mxu0 0.0
    %80 = vmatpush1.msra.mxu0 0.0
    %81 = vmatprep.subr.mxu0 0.0
    %82 = vmatpush1.msra.mxu0 0.0
    %83 = vmatprep.subr.mxu0 0.0
    %84 = vmatpush1.msra.mxu0 0.0
    %85 = vmatprep.subr.mxu0 0.0
    %86 = vmatpush1.msra.mxu0 0.0
    %87 = vmatprep.subr.mxu0 0.0
    %88 = vmatpush1.msra.mxu0 0.0
    %89 = vmatprep.subr.mxu0 0.0
    %90 = vmatpush1.msra.mxu0 0.0
    %91 = vmatprep.subr.mxu0 0.0
    %92 = vmatpush1.msra.mxu0 0.0
    %93 = vmatprep.subr.mxu0 0.0
    %94 = vmatpush1.msra.mxu0 0.0
    %95 = vmatprep.subr.mxu0 0.0
    %96 = vmatpush1.msra.mxu0 0.0
    %97 = vmatprep.subr.mxu0 0.0
    %98 = vmatpush1.msra.mxu0 0.0
    %99 = vmatprep.subr.mxu0 0.0
    %100 = vmatpush1.msra.mxu0 0.0
    %101 = vmatprep.subr.mxu0 0.0
    %102 = vmatpush1.msra.mxu0 0.0
    %103 = vmatprep.subr.mxu0 0.0
    %104 = vmatpush1.msra.mxu0 0.0
    %105 = vmatprep.subr.mxu0 0.0
    %106 = vmatpush1.msra.mxu0 0.0
    %107 = vmatprep.subr.mxu0 0.0
    %108 = vmatpush1.msra.mxu0 0.0
    %109 = vmatprep.subr.mxu0 0.0
    %110 = vmatpush1.msra.mxu0 0.0
    %111 = vmatprep.subr.mxu0 0.0
    %112 = vmatpush1.msra.mxu0 0.0
    %113 = vmatprep.subr.mxu0 0.0
    %114 = vmatpush1.msra.mxu0 0.0
    %115 = vmatprep.subr.mxu0 0.0
    %116 = vmatpush1.msra.mxu0 0.0
    %117 = vmatprep.subr.mxu0 0.0
    %118 = vmatpush1.msra.mxu0 0.0
    %119 = vmatprep.subr.mxu0 0.0
    %120 = vmatpush1.msra.mxu0 0.0
    %121 = vmatprep.mubr.f32.mxu0 0.0
    %122 = vmatmul.mubr.f32.gmra.mrb[0].mxu0 %v55
    %v123 = vpop.f32.mrb[0].mxu0
    %v124 = vadd.f32 %v51, %v123
    %v125 = vpop.f32.mrb[0].mxu0
    %126 = vdwg.mxu0
    %v127 = vmul.f32 %v124, 0.01
    %v128 = vmax.f32 %v124, %v127
    %v129 = vld [vmem:[%s3] sm:$0xff]
    %v130 = vld [vmem:[%s3 + $0x8] sm:$0xff]
    %v131 = vld [vmem:[%s3 + $0x10] sm:$0xff]
    %v132 = vld [vmem:[%s3 + $0x18] sm:$0xff]
    %v133 = vld [vmem:[%s3 + $0x20] sm:$0xff]
    %v134 = vld [vmem:[%s3 + $0x28] sm:$0xff]
    %v135 = vld [vmem:[%s3 + $0x30] sm:$0xff]
    %v136 = vld [vmem:[%s3 + $0x38] sm:$0xff]
    %v137 = vld [vmem:[%s3 + $0x40] sm:$0xff]
    %v138 = vld [vmem:[%s3 + $0x48] sm:$0xff]
    %v139 = vld [vmem:[%s3 + $0x50] sm:$0xff]
    %v140 = vld [vmem:[%s3 + $0x58] sm:$0xff]
    %v141 = vld [vmem:[%s3 + $0x60] sm:$0xff]
    %v142 = vld [vmem:[%s3 + $0x68] sm:$0xff]
    %v143 = vld [vmem:[%s3 + $0x70] sm:$0xff]
    %v144 = vld [vmem:[%s3 + $0x78] sm:$0xff]
    %v145 = vld [vmem:[%s4] sm:$0x1]
    %v147 = vlaneseq
    %v148 = vshrl.u32 %v147, 7
    %v149 = vsub.s32 0, %v148
    %v150 = vrot.slane %v145, %v149
    %152 = vmatprep.subr.mxu0 0.0
    %153 = vmatpush1.msra.mxu0 %v129
    %154 = vmatprep.subr.mxu0 0.0
    %155 = vmatpush1.msra.mxu0 %v130
    %156 = vmatprep.subr.mxu0 0.0
    %157 = vmatpush1.msra.mxu0 %v131
    %158 = vmatprep.subr.mxu0 0.0
    %159 = vmatpush1.msra.mxu0 %v132
    %160 = vmatprep.subr.mxu0 0.0
    %161 = vmatpush1.msra.mxu0 %v133
    %162 = vmatprep.subr.mxu0 0.0
    %163 = vmatpush1.msra.mxu0 %v134
    %164 = vmatprep.subr.mxu0 0.0
    %165 = vmatpush1.msra.mxu0 %v135
    %166 = vmatprep.subr.mxu0 0.0
    %167 = vmatpush1.msra.mxu0 %v136
    %168 = vmatprep.subr.mxu0 0.0
    %169 = vmatpush1.msra.mxu0 %v137
    %170 = vmatprep.subr.mxu0 0.0
    %171 = vmatpush1.msra.mxu0 %v138
    %172 = vmatprep.subr.mxu0 0.0
    %173 = vmatpush1.msra.mxu0 %v139
    %174 = vmatprep.subr.mxu0 0.0
    %175 = vmatpush1.msra.mxu0 %v140
    %176 = vmatprep.subr.mxu0 0.0
    %177 = vmatpush1.msra.mxu0 %v141
    %178 = vmatprep.subr.mxu0 0.0
    %179 = vmatpush1.msra.mxu0 %v142
    %180 = vmatprep.subr.mxu0 0.0
    %181 = vmatpush1.msra.mxu0 %v143
    %182 = vmatprep.subr.mxu0 0.0
    %183 = vmatpush1.msra.mxu0 %v144
    %184 = vmatprep.subr.mxu0 0.0
    %185 = vmatpush1.msra.mxu0 0.0
    %186 = vmatprep.subr.mxu0 0.0
    %187 = vmatpush1.msra.mxu0 0.0
    %188 = vmatprep.subr.mxu0 0.0
    %189 = vmatpush1.msra.mxu0 0.0
    %190 = vmatprep.subr.mxu0 0.0
    %191 = vmatpush1.msra.mxu0 0.0
    %192 = vmatprep.subr.mxu0 0.0
    %193 = vmatpush1.msra.mxu0 0.0
    %194 = vmatprep.subr.mxu0 0.0
    %195 = vmatpush1.msra.mxu0 0.0
    %196 = vmatprep.subr.mxu0 0.0
    %197 = vmatpush1.msra.mxu0 0.0
    %198 = vmatprep.subr.mxu0 0.0
    %199 = vmatpush1.msra.mxu0 0.0
    %200 = vmatprep.subr.mxu0 0.0
    %201 = vmatpush1.msra.mxu0 0.0
    %202 = vmatprep.subr.mxu0 0.0
    %203 = vmatpush1.msra.mxu0 0.0
    %204 = vmatprep.subr.mxu0 0.0
    %205 = vmatpush1.msra.mxu0 0.0
    %206 = vmatprep.subr.mxu0 0.0
    %207 = vmatpush1.msra.mxu0 0.0
    %208 = vmatprep.subr.mxu0 0.0
    %209 = vmatpush1.msra.mxu0 0.0
    %210 = vmatprep.subr.mxu0 0.0
    %211 = vmatpush1.msra.mxu0 0.0
    %212 = vmatprep.subr.mxu0 0.0
    %213 = vmatpush1.msra.mxu0 0.0
    %214 = vmatprep.subr.mxu0 0.0
    %215 = vmatpush1.msra.mxu0 0.0
    %216 = vmatprep.mubr.f32.mxu0 0.0
    %217 = vmatmul.mubr.f32.gmra.mrb[0].mxu0 %v128
    %v218 = vpop.f32.mrb[0].mxu0
    %v219 = vadd.f32 %v150, %v218
    %v220 = vpop.f32.mrb[0].mxu0
    %221 = vdwg.mxu0
    %v222 = vmul.f32 %v219, 0.01
    %v223 = vmax.f32 %v219, %v222
    %v224 = vld [vmem:[%s5] sm:$0xff]
    %v225 = vld [vmem:[%s5 + $0x8] sm:$0xff]
    %v226 = vld [vmem:[%s5 + $0x10] sm:$0xff]
    %v227 = vld [vmem:[%s5 + $0x18] sm:$0xff]
    %v228 = vld [vmem:[%s5 + $0x20] sm:$0xff]
    %v229 = vld [vmem:[%s5 + $0x28] sm:$0xff]
    %v230 = vld [vmem:[%s5 + $0x30] sm:$0xff]
    %v231 = vld [vmem:[%s5 + $0x38] sm:$0xff]
    %v232 = vld [vmem:[%s5 + $0x40] sm:$0xff]
    %v233 = vld [vmem:[%s5 + $0x48] sm:$0xff]
    %v234 = vld [vmem:[%s5 + $0x50] sm:$0xff]
    %v235 = vld [vmem:[%s5 + $0x58] sm:$0xff]
    %v236 = vld [vmem:[%s5 + $0x60] sm:$0xff]
    %v237 = vld [vmem:[%s5 + $0x68] sm:$0xff]
    %v238 = vld [vmem:[%s5 + $0x70] sm:$0xff]
    %v239 = vld [vmem:[%s5 + $0x78] sm:$0xff]
    %v240 = vld [vmem:[%s6] sm:$0x1]
    %v242 = vlaneseq
    %v243 = vshrl.u32 %v242, 7
    %v244 = vsub.s32 0, %v243
    %v245 = vrot.slane %v240, %v244
    %247 = vmatprep.subr.mxu0 0.0
    %248 = vmatpush1.msra.mxu0 %v224
    %249 = vmatprep.subr.mxu0 0.0
    %250 = vmatpush1.msra.mxu0 %v225
    %251 = vmatprep.subr.mxu0 0.0
    %252 = vmatpush1.msra.mxu0 %v226
    %253 = vmatprep.subr.mxu0 0.0
    %254 = vmatpush1.msra.mxu0 %v227
    %255 = vmatprep.subr.mxu0 0.0
    %256 = vmatpush1.msra.mxu0 %v228
    %257 = vmatprep.subr.mxu0 0.0
    %258 = vmatpush1.msra.mxu0 %v229
    %259 = vmatprep.subr.mxu0 0.0
    %260 = vmatpush1.msra.mxu0 %v230
    %261 = vmatprep.subr.mxu0 0.0
    %262 = vmatpush1.msra.mxu0 %v231
    %263 = vmatprep.subr.mxu0 0.0
    %264 = vmatpush1.msra.mxu0 %v232
    %265 = vmatprep.subr.mxu0 0.0
    %266 = vmatpush1.msra.mxu0 %v233
    %267 = vmatprep.subr.mxu0 0.0
    %268 = vmatpush1.msra.mxu0 %v234
    %269 = vmatprep.subr.mxu0 0.0
    %270 = vmatpush1.msra.mxu0 %v235
    %271 = vmatprep.subr.mxu0 0.0
    %272 = vmatpush1.msra.mxu0 %v236
    %273 = vmatprep.subr.mxu0 0.0
    %274 = vmatpush1.msra.mxu0 %v237
    %275 = vmatprep.subr.mxu0 0.0
    %276 = vmatpush1.msra.mxu0 %v238
    %277 = vmatprep.subr.mxu0 0.0
    %278 = vmatpush1.msra.mxu0 %v239
    %279 = vmatprep.subr.mxu0 0.0
    %280 = vmatpush1.msra.mxu0 0.0
    %281 = vmatprep.subr.mxu0 0.0
    %282 = vmatpush1.msra.mxu0 0.0
    %283 = vmatprep.subr.mxu0 0.0
    %284 = vmatpush1.msra.mxu0 0.0
    %285 = vmatprep.subr.mxu0 0.0
    %286 = vmatpush1.msra.mxu0 0.0
    %287 = vmatprep.subr.mxu0 0.0
    %288 = vmatpush1.msra.mxu0 0.0
    %289 = vmatprep.subr.mxu0 0.0
    %290 = vmatpush1.msra.mxu0 0.0
    %291 = vmatprep.subr.mxu0 0.0
    %292 = vmatpush1.msra.mxu0 0.0
    %293 = vmatprep.subr.mxu0 0.0
    %294 = vmatpush1.msra.mxu0 0.0
    %295 = vmatprep.subr.mxu0 0.0
    %296 = vmatpush1.msra.mxu0 0.0
    %297 = vmatprep.subr.mxu0 0.0
    %298 = vmatpush1.msra.mxu0 0.0
    %299 = vmatprep.subr.mxu0 0.0
    %300 = vmatpush1.msra.mxu0 0.0
    %301 = vmatprep.subr.mxu0 0.0
    %302 = vmatpush1.msra.mxu0 0.0
    %303 = vmatprep.subr.mxu0 0.0
    %304 = vmatpush1.msra.mxu0 0.0
    %305 = vmatprep.subr.mxu0 0.0
    %306 = vmatpush1.msra.mxu0 0.0
    %307 = vmatprep.subr.mxu0 0.0
    %308 = vmatpush1.msra.mxu0 0.0
    %309 = vmatprep.subr.mxu0 0.0
    %310 = vmatpush1.msra.mxu0 0.0
    %311 = vmatprep.mubr.f32.mxu0 0.0
    %312 = vmatmul.mubr.f32.gmra.mrb[0].mxu0 %v223
    %v313 = vpop.f32.mrb[0].mxu0
    %v314 = vadd.f32 %v245, %v313
    %v315 = vpop.f32.mrb[0].mxu0
    %316 = vdwg.mxu0
    %v317 = vtanh.pop %v314
    %vm318 = vcmask 64512
    %319 = vst.msk [vmem:[#allocation5] sm:$0xff] %vm318, %v317
    // Predicated region
    $region34: #{tpu_custom_call.1} parent=1 // pred_check
      _
    $region35: #{tpu_custom_call.1} parent=1 // pred_check_branch
      %321 = sbr.rel (0) target = $region37
    $region36: #{tpu_custom_call.1} parent=1 // pred_region
      %s323 = ssub.s32 128, 128
      %324 = vsyncadd [#allocation4], %s323
      %s326 = sshll.u32 [#allocation5], 4
      %s327 = int_to_ptr.vmem [resolvable:$true] %s326
      %329 = dma.vmem_to_hbm [thread:$0]  %s327, 128, %s7, [#allocation4]
    $region37: #{tpu_custom_call.1} parent=1 // pred_fallthru
      _
    // Predicated region
    $region38: #{tpu_custom_call.1} parent=1 // pred_check
      _
    $region39: #{tpu_custom_call.1} parent=1 // pred_check_branch
      %331 = sbr.rel (0) target = $region41
    $region40: #{tpu_custom_call.1} parent=1 // pred_region
      %332 = dma.done [#allocation4], 128
    $region41: #{tpu_custom_call.1} parent=1 // pred_fallthru
      _
    %333 = vsyncpa [#allocation3], 1
    %334 = vsyncpa [#allocation4], 1

</llo_original>
